<compile_context>
chip_gen: v5e
topology: v5e:2x2
jax: 0.10.0
libtpu: 0.0.40
codegen_flags: <defaults>
</compile_context>

<pallas_src>
import functools

import numpy as np
import jax
import jax.numpy as jnp
from jax.experimental import pallas as pl
from jax.experimental.pallas import tpu as pltpu


def _round_up(v, m):
    return (v + m - 1) // m * m


def _conv_block_a_kernel(x_ref, mask_ref, w1_ref, b1_ref, w2_ref, b2_ref,
                         wp_ref, bp_ref, sel_ref, o_ref, *, W, HW, B):
    # x_ref:    (1, Cp, B*HW)   f32   B images folded onto the lane axis
    # mask_ref: (9, B*HW)       f32   0/1 boundary masks per 3x3 tap (host-built)
    # w1/w2:    (Cp, 9*Cp)      bf16  stacked per-tap weights (tap-major, cin-minor)
    # wp:       (Coutp, 4*Cp)   bf16
    # b1/b2:    (Cp, 1) f32 ; bp: (Coutp, 1) f32
    # sel_ref:  (HW, HoWo)      bf16  stride-2 decimation selector (host-built)
    # o_ref:    (1, Coutp, B*HoWo) f32
    x = x_ref[0]                                     # (Cp, B*HW) f32
    relu_x = jnp.maximum(x, 0.0)

    masks = mask_ref[...]                            # loaded once, shared by conv1/conv2
    taps3 = []
    t = 0
    for dy in (-1, 0, 1):
        for dx in (-1, 0, 1):
            off = dy * W + dx
            m = None if (dy == 0 and dx == 0) else masks[t:t + 1, :]
            taps3.append((off, m))
            t += 1

    def im2col3(src):
        # Stack masked lane-rotated copies along sublanes -> (9*Cp, B*HW) bf16.
        cols = []
        for off, m in taps3:
            r = src if off == 0 else jnp.roll(src, -off, axis=1)
            if m is not None:
                r = r * m                            # zero-padding at image borders
            cols.append(r)
        return jnp.concatenate(cols, axis=0).astype(jnp.bfloat16)

    # c1 = conv1(x); c1s = c1 + relu(x)
    c1 = jnp.dot(w1_ref[...], im2col3(x),
                 preferred_element_type=jnp.float32) + b1_ref[...]
    c1s = c1 + relu_x

    # c2 = conv2(c1s)   (c2s = c2 + relu(c1s) is dead code in the torch module)
    c2 = jnp.dot(w2_ref[...], im2col3(c1s),
                 preferred_element_type=jnp.float32) + b2_ref[...]

    # convp: 2x2 kernel, stride 2, no padding.  Evaluate the 4 taps at every
    # position (positions kept by the stride-2 decimation never read past an
    # image end, so no mask is needed), then decimate per image with the
    # host-built selector (one nonzero per column -> exact selection).
    cols2 = jnp.concatenate(
        [c2] + [jnp.roll(c2, -o, axis=1) for o in (1, W, W + 1)],
        axis=0).astype(jnp.bfloat16)                 # (4*Cp, B*HW)
    q = jnp.dot(wp_ref[...], cols2,
                preferred_element_type=jnp.float32)  # (Coutp, B*HW)

    qb = q.astype(jnp.bfloat16)
    sel = sel_ref[...]                               # (HW, HoWo) 0/1 bf16
    outs = [jnp.dot(qb[:, b * HW:(b + 1) * HW], sel,
                    preferred_element_type=jnp.float32) for b in range(B)]
    out = outs[0] if B == 1 else jnp.concatenate(outs, axis=1)
    o_ref[0] = (out + bp_ref[...]).astype(o_ref.dtype)


def conv_block_a(x_nchw, params, *, block_batch=None):
    """Pallas implementation of ConvBlockA.forward.  x_nchw: (N, Cin, H, W)."""
    w1, b1, w2, b2, wp, bp = params          # PyTorch layouts (O,I,KH,KW), (O,)
    N, C, H, W = x_nchw.shape
    Cout = wp.shape[0]
    assert H % 2 == 0 and W % 2 == 0, "stride-2 path assumes even H, W"
    Ho, Wo = H // 2, W // 2
    HW, HoWo = H * W, Ho * Wo

    # Images per grid step, folded onto the lane axis.  B=2 makes the output
    # slab lane-dense (2*HoWo = 128 at 16x16) and halves per-step overhead; for
    # N >= 4 the grid keeps >= 2 steps so both v7x TensorCores stay fed.
    if block_batch is None:
        block_batch = 2 if N % 2 == 0 else 1
    B = block_batch
    assert N % B == 0
    G = N // B

    Cp = max(8, _round_up(C, 8))       # pad channels: taps align to 8-sublane tiles
    Coutp = max(8, _round_up(Cout, 8))

    # ---- activations: NCHW -> (G, Cp, B*HW)  (HW, then batch, on the lane axis)
    x_flat = x_nchw.astype(jnp.float32).reshape(N, C, HW)
    if Cp != C:
        x_flat = jnp.pad(x_flat, ((0, 0), (0, Cp - C), (0, 0)))
    x_fold = (x_flat.reshape(G, B, Cp, HW)
              .transpose(0, 2, 1, 3)
              .reshape(G, Cp, B * HW))

    # ---- weights: stacked per-tap columns (tap-major, cin-minor), bf16 for MXU
    def stack33(w):
        wpad = jnp.pad(w, ((0, Cp - w.shape[0]), (0, Cp - w.shape[1]),
                           (0, 0), (0, 0)))
        return (jnp.transpose(wpad, (0, 2, 3, 1))
                .reshape(Cp, 9 * Cp).astype(jnp.bfloat16))

    w1_m, w2_m = stack33(w1), stack33(w2)
    wp_pad = jnp.pad(wp, ((0, Coutp - Cout), (0, Cp - C), (0, 0), (0, 0)))
    wp_m = (jnp.transpose(wp_pad, (0, 2, 3, 1))
            .reshape(Coutp, 4 * Cp).astype(jnp.bfloat16))

    b1_c = jnp.pad(b1, (0, Cp - C)).reshape(Cp, 1).astype(jnp.float32)
    b2_c = jnp.pad(b2, (0, Cp - C)).reshape(Cp, 1).astype(jnp.float32)
    bp_c = jnp.pad(bp, (0, Coutp - Cout)).reshape(Coutp, 1).astype(jnp.float32)

    # ---- host-built constants (constant index_map -> fetched once, VMEM-resident)
    hh, ww = np.divmod(np.arange(HW, dtype=np.int64), W)
    rows = []
    for dy in (-1, 0, 1):
        for dx in (-1, 0, 1):
            valid = ((hh + dy >= 0) & (hh + dy < H) &
                     (ww + dx >= 0) & (ww + dx < W)).astype(np.float32)
            rows.append(np.tile(valid, B))           # tiled per image in the slab
    mask3 = jnp.asarray(np.stack(rows))              # (9, B*HW) f32

    j = np.arange(HoWo, dtype=np.int64)
    src = 2 * ((j // Wo) * W + (j % Wo))
    sel_np = np.zeros((HW, HoWo), np.float32)
    sel_np[src, j] = 1.0
    sel = jnp.asarray(sel_np, dtype=jnp.bfloat16)    # (HW, HoWo), exact 0/1 in bf16

    kernel = functools.partial(_conv_block_a_kernel, W=W, HW=HW, B=B)

    flops = N * (2 * HW * (18 * Cp * Cp + 4 * Cp * Coutp)
                 + 2 * HW * HoWo * Coutp)
    bytes_accessed = (4 * (x_fold.size + G * Coutp * B * HoWo + mask3.size
                           + b1_c.size + b2_c.size + bp_c.size)
                      + 2 * (w1_m.size + w2_m.size + wp_m.size + sel.size))

    const2 = lambda g: (0, 0)
    out = pl.pallas_call(
        kernel,
        out_shape=jax.ShapeDtypeStruct((G, Coutp, B * HoWo), jnp.float32),
        grid_spec=pltpu.PrefetchScalarGridSpec(
            num_scalar_prefetch=0,
            grid=(G,),
            in_specs=[
                pl.BlockSpec((1, Cp, B * HW), lambda g: (g, 0, 0)),
                pl.BlockSpec((9, B * HW), const2),
                pl.BlockSpec((Cp, 9 * Cp), const2),
                pl.BlockSpec((Cp, 1), const2),
                pl.BlockSpec((Cp, 9 * Cp), const2),
                pl.BlockSpec((Cp, 1), const2),
                pl.BlockSpec((Coutp, 4 * Cp), const2),
                pl.BlockSpec((Coutp, 1), const2),
                pl.BlockSpec((HW, HoWo), const2),
            ],
            out_specs=pl.BlockSpec((1, Coutp, B * HoWo), lambda g: (g, 0, 0)),
        ),
        compiler_params=pltpu.CompilerParams(
            # On v7x one may switch this to pltpu.CORE_PARALLEL once G >= 2.
            dimension_semantics=("parallel",)),
        cost_estimate=pl.CostEstimate(
            flops=flops, transcendentals=0, bytes_accessed=bytes_accessed),
    )(x_fold, mask3, w1_m, b1_c, w2_m, b2_c, wp_m, bp_c, sel)

    # (G, Coutp, B*HoWo) -> NCHW
    y = (out.reshape(G, Coutp, B, HoWo)
         .transpose(0, 2, 1, 3)
         .reshape(N, Coutp, Ho, Wo))
    return y[:, :Cout] if Coutp != Cout else y


# ----------------------- reference / parameter setup ------------------------

def reference_forward(x, params):
    w1, b1, w2, b2, wp, bp = params

    def conv(inp, w, b, stride, pad):
        y = jax.lax.conv_general_dilated(
            inp, w, window_strides=(stride, stride),
            padding=((pad, pad), (pad, pad)),
            dimension_numbers=("NCHW", "OIHW", "NCHW"))
        return y + b[None, :, None, None]

    c1 = conv(x, w1, b1, 1, 1)
    c1s = c1 + jax.nn.relu(x)
    c2 = conv(c1s, w2, b2, 1, 1)
    # c2s = c2 + relu(c1s)  # dead code in the torch module; unused
    return conv(c2, wp, bp, 2, 0)


def init_params(key, cin, cout):
    ks = jax.random.split(key, 6)

    def u(k, shape, fan_in):
        bound = 1.0 / float(np.sqrt(fan_in))
        return jax.random.uniform(k, shape, jnp.float32, -bound, bound)

    w1 = u(ks[0], (cin, cin, 3, 3), cin * 9)
    b1 = u(ks[1], (cin,), cin * 9)
    w2 = u(ks[2], (cin, cin, 3, 3), cin * 9)
    b2 = u(ks[3], (cin,), cin * 9)
    wp = u(ks[4], (cout, cin, 2, 2), cin * 4)
    bp = u(ks[5], (cout,), cin * 4)
    return (w1, b1, w2, b2, wp, bp)


if __name__ == "__main__":
    key = jax.random.PRNGKey(0)
    kx, kp = jax.random.split(key)
    N, C, H, W, COUT = 2, 4, 16, 16, 8

    x = jax.random.normal(kx, (N, C, H, W), jnp.float32)
    params = init_params(kp, C, COUT)

    y = conv_block_a(x, params)
    y = jax.block_until_ready(y)

    y_ref = reference_forward(x, params)
    assert y.shape == (N, COUT, H // 2, W // 2), y.shape
    max_err = float(jnp.max(jnp.abs(y - y_ref)))
    assert max_err < 2e-2, f"max abs error {max_err}"
    print("KERNEL_OK")
</pallas_src>

<mosaic_0001>
module attributes {stable_mosaic.version = 11 : i64} {
  func.func @_conv_block_a_kernel(%arg0: i32, %arg1: memref<1x8x512xf32, #tpu.memory_space<vmem>>, %arg2: memref<9x512xf32, #tpu.memory_space<vmem>>, %arg3: memref<8x72xbf16, #tpu.memory_space<vmem>>, %arg4: memref<8x1xf32, #tpu.memory_space<vmem>>, %arg5: memref<8x72xbf16, #tpu.memory_space<vmem>>, %arg6: memref<8x1xf32, #tpu.memory_space<vmem>>, %arg7: memref<8x32xbf16, #tpu.memory_space<vmem>>, %arg8: memref<8x1xf32, #tpu.memory_space<vmem>>, %arg9: memref<256x64xbf16, #tpu.memory_space<vmem>>, %arg10: memref<1x8x128xf32, #tpu.memory_space<vmem>>) attributes {dimension_semantics = [#tpu.dimension_semantics<parallel>], iteration_bounds = array<i64: 1>, scalar_prefetch = 0 : i64, scratch_operands = 0 : i64, tpu.core_type = #tpu.core_type<tc>, window_params = [{transform_indices = @transform_0, window_bounds = array<i64: 1, 8, 512>}, {pipeline_mode = #tpu.pipeline_mode<synchronous>, transform_indices = @transform_1, window_bounds = array<i64: 9, 512>}, {pipeline_mode = #tpu.pipeline_mode<synchronous>, transform_indices = @transform_2, window_bounds = array<i64: 8, 72>}, {pipeline_mode = #tpu.pipeline_mode<synchronous>, transform_indices = @transform_3, window_bounds = array<i64: 8, 1>}, {pipeline_mode = #tpu.pipeline_mode<synchronous>, transform_indices = @transform_4, window_bounds = array<i64: 8, 72>}, {pipeline_mode = #tpu.pipeline_mode<synchronous>, transform_indices = @transform_5, window_bounds = array<i64: 8, 1>}, {pipeline_mode = #tpu.pipeline_mode<synchronous>, transform_indices = @transform_6, window_bounds = array<i64: 8, 32>}, {pipeline_mode = #tpu.pipeline_mode<synchronous>, transform_indices = @transform_7, window_bounds = array<i64: 8, 1>}, {pipeline_mode = #tpu.pipeline_mode<synchronous>, transform_indices = @transform_8, window_bounds = array<i64: 256, 64>}, {transform_indices = @transform_9, window_bounds = array<i64: 1, 8, 128>}]} {
    %c0 = arith.constant 0 : index
    %c0_0 = arith.constant 0 : index
    %c0_1 = arith.constant 0 : index
    %0 = vector.load %arg1[%c0, %c0_0, %c0_1] : memref<1x8x512xf32, #tpu.memory_space<vmem>>, vector<1x8x512xf32>
    %1 = vector.shape_cast %0 : vector<1x8x512xf32> to vector<8x512xf32>
    %cst = arith.constant 0.000000e+00 : f32
    %2 = vector.broadcast %cst : f32 to vector<8x512xf32>
    %3 = arith.maximumf %1, %2 : vector<8x512xf32>
    %c0_2 = arith.constant 0 : index
    %c0_3 = arith.constant 0 : index
    %4 = vector.load %arg2[%c0_2, %c0_3] : memref<9x512xf32, #tpu.memory_space<vmem>>, vector<9x512xf32>
    %5 = vector.extract_strided_slice %4 {offsets = [0, 0], sizes = [1, 512], strides = [1, 1]} : vector<9x512xf32> to vector<1x512xf32>
    %6 = vector.extract_strided_slice %4 {offsets = [1, 0], sizes = [1, 512], strides = [1, 1]} : vector<9x512xf32> to vector<1x512xf32>
    %7 = vector.extract_strided_slice %4 {offsets = [2, 0], sizes = [1, 512], strides = [1, 1]} : vector<9x512xf32> to vector<1x512xf32>
    %8 = vector.extract_strided_slice %4 {offsets = [3, 0], sizes = [1, 512], strides = [1, 1]} : vector<9x512xf32> to vector<1x512xf32>
    %9 = vector.extract_strided_slice %4 {offsets = [5, 0], sizes = [1, 512], strides = [1, 1]} : vector<9x512xf32> to vector<1x512xf32>
    %10 = vector.extract_strided_slice %4 {offsets = [6, 0], sizes = [1, 512], strides = [1, 1]} : vector<9x512xf32> to vector<1x512xf32>
    %11 = vector.extract_strided_slice %4 {offsets = [7, 0], sizes = [1, 512], strides = [1, 1]} : vector<9x512xf32> to vector<1x512xf32>
    %12 = vector.extract_strided_slice %4 {offsets = [8, 0], sizes = [1, 512], strides = [1, 1]} : vector<9x512xf32> to vector<1x512xf32>
    %c0_4 = arith.constant 0 : index
    %c0_5 = arith.constant 0 : index
    %13 = vector.load %arg3[%c0_4, %c0_5] : memref<8x72xbf16, #tpu.memory_space<vmem>>, vector<8x72xbf16>
    %14 = vector.extract_strided_slice %1 {offsets = [0, 495], sizes = [8, 17], strides = [1, 1]} : vector<8x512xf32> to vector<8x17xf32>
    %15 = vector.extract_strided_slice %1 {offsets = [0, 0], sizes = [8, 495], strides = [1, 1]} : vector<8x512xf32> to vector<8x495xf32>
    %16 = tpu.concatenate %14, %15 in 1 : vector<8x17xf32>, vector<8x495xf32> -> vector<8x512xf32>
    %17 = vector.broadcast %5 : vector<1x512xf32> to vector<8x512xf32>
    %18 = arith.mulf %16, %17 : vector<8x512xf32>
    %19 = vector.extract_strided_slice %1 {offsets = [0, 496], sizes = [8, 16], strides = [1, 1]} : vector<8x512xf32> to vector<8x16xf32>
    %20 = vector.extract_strided_slice %1 {offsets = [0, 0], sizes = [8, 496], strides = [1, 1]} : vector<8x512xf32> to vector<8x496xf32>
    %21 = tpu.concatenate %19, %20 in 1 : vector<8x16xf32>, vector<8x496xf32> -> vector<8x512xf32>
    %22 = vector.broadcast %6 : vector<1x512xf32> to vector<8x512xf32>
    %23 = arith.mulf %21, %22 : vector<8x512xf32>
    %24 = vector.extract_strided_slice %1 {offsets = [0, 497], sizes = [8, 15], strides = [1, 1]} : vector<8x512xf32> to vector<8x15xf32>
    %25 = vector.extract_strided_slice %1 {offsets = [0, 0], sizes = [8, 497], strides = [1, 1]} : vector<8x512xf32> to vector<8x497xf32>
    %26 = tpu.concatenate %24, %25 in 1 : vector<8x15xf32>, vector<8x497xf32> -> vector<8x512xf32>
    %27 = vector.broadcast %7 : vector<1x512xf32> to vector<8x512xf32>
    %28 = arith.mulf %26, %27 : vector<8x512xf32>
    %29 = vector.extract_strided_slice %1 {offsets = [0, 511], sizes = [8, 1], strides = [1, 1]} : vector<8x512xf32> to vector<8x1xf32>
    %30 = vector.extract_strided_slice %1 {offsets = [0, 0], sizes = [8, 511], strides = [1, 1]} : vector<8x512xf32> to vector<8x511xf32>
    %31 = tpu.concatenate %29, %30 in 1 : vector<8x1xf32>, vector<8x511xf32> -> vector<8x512xf32>
    %32 = vector.broadcast %8 : vector<1x512xf32> to vector<8x512xf32>
    %33 = arith.mulf %31, %32 : vector<8x512xf32>
    %34 = vector.extract_strided_slice %1 {offsets = [0, 1], sizes = [8, 511], strides = [1, 1]} : vector<8x512xf32> to vector<8x511xf32>
    %35 = vector.extract_strided_slice %1 {offsets = [0, 0], sizes = [8, 1], strides = [1, 1]} : vector<8x512xf32> to vector<8x1xf32>
    %36 = tpu.concatenate %34, %35 in 1 : vector<8x511xf32>, vector<8x1xf32> -> vector<8x512xf32>
    %37 = vector.broadcast %9 : vector<1x512xf32> to vector<8x512xf32>
    %38 = arith.mulf %36, %37 : vector<8x512xf32>
    %39 = vector.extract_strided_slice %1 {offsets = [0, 15], sizes = [8, 497], strides = [1, 1]} : vector<8x512xf32> to vector<8x497xf32>
    %40 = vector.extract_strided_slice %1 {offsets = [0, 0], sizes = [8, 15], strides = [1, 1]} : vector<8x512xf32> to vector<8x15xf32>
    %41 = tpu.concatenate %39, %40 in 1 : vector<8x497xf32>, vector<8x15xf32> -> vector<8x512xf32>
    %42 = vector.broadcast %10 : vector<1x512xf32> to vector<8x512xf32>
    %43 = arith.mulf %41, %42 : vector<8x512xf32>
    %44 = vector.extract_strided_slice %1 {offsets = [0, 16], sizes = [8, 496], strides = [1, 1]} : vector<8x512xf32> to vector<8x496xf32>
    %45 = vector.extract_strided_slice %1 {offsets = [0, 0], sizes = [8, 16], strides = [1, 1]} : vector<8x512xf32> to vector<8x16xf32>
    %46 = tpu.concatenate %44, %45 in 1 : vector<8x496xf32>, vector<8x16xf32> -> vector<8x512xf32>
    %47 = vector.broadcast %11 : vector<1x512xf32> to vector<8x512xf32>
    %48 = arith.mulf %46, %47 : vector<8x512xf32>
    %49 = vector.extract_strided_slice %1 {offsets = [0, 17], sizes = [8, 495], strides = [1, 1]} : vector<8x512xf32> to vector<8x495xf32>
    %50 = vector.extract_strided_slice %1 {offsets = [0, 0], sizes = [8, 17], strides = [1, 1]} : vector<8x512xf32> to vector<8x17xf32>
    %51 = tpu.concatenate %49, %50 in 1 : vector<8x495xf32>, vector<8x17xf32> -> vector<8x512xf32>
    %52 = vector.broadcast %12 : vector<1x512xf32> to vector<8x512xf32>
    %53 = arith.mulf %51, %52 : vector<8x512xf32>
    %54 = tpu.concatenate %18, %23, %28, %33, %1, %38, %43, %48, %53 in 0 : vector<8x512xf32>, vector<8x512xf32>, vector<8x512xf32>, vector<8x512xf32>, vector<8x512xf32>, vector<8x512xf32>, vector<8x512xf32>, vector<8x512xf32>, vector<8x512xf32> -> vector<72x512xf32>
    %55 = arith.truncf %54 : vector<72x512xf32> to vector<72x512xbf16>
    %cst_6 = arith.constant dense<0.000000e+00> : vector<8x512xf32>
    %56 = tpu.matmul %13, %55, %cst_6 {dimension_numbers = #tpu.dot_dimension_numbers<[1], [0], [0], [1], [0, 0, 1, 1], [], []>} : vector<8x72xbf16>, vector<72x512xbf16>, vector<8x512xf32> -> vector<8x512xf32>
    %c0_7 = arith.constant 0 : index
    %c0_8 = arith.constant 0 : index
    %57 = vector.load %arg4[%c0_7, %c0_8] : memref<8x1xf32, #tpu.memory_space<vmem>>, vector<8x1xf32>
    %58 = vector.broadcast %57 : vector<8x1xf32> to vector<8x512xf32>
    %59 = arith.addf %56, %58 : vector<8x512xf32>
    %60 = arith.addf %59, %3 : vector<8x512xf32>
    %c0_9 = arith.constant 0 : index
    %c0_10 = arith.constant 0 : index
    %61 = vector.load %arg5[%c0_9, %c0_10] : memref<8x72xbf16, #tpu.memory_space<vmem>>, vector<8x72xbf16>
    %62 = vector.extract_strided_slice %60 {offsets = [0, 495], sizes = [8, 17], strides = [1, 1]} : vector<8x512xf32> to vector<8x17xf32>
    %63 = vector.extract_strided_slice %60 {offsets = [0, 0], sizes = [8, 495], strides = [1, 1]} : vector<8x512xf32> to vector<8x495xf32>
    %64 = tpu.concatenate %62, %63 in 1 : vector<8x17xf32>, vector<8x495xf32> -> vector<8x512xf32>
    %65 = vector.broadcast %5 : vector<1x512xf32> to vector<8x512xf32>
    %66 = arith.mulf %64, %65 : vector<8x512xf32>
    %67 = vector.extract_strided_slice %60 {offsets = [0, 496], sizes = [8, 16], strides = [1, 1]} : vector<8x512xf32> to vector<8x16xf32>
    %68 = vector.extract_strided_slice %60 {offsets = [0, 0], sizes = [8, 496], strides = [1, 1]} : vector<8x512xf32> to vector<8x496xf32>
    %69 = tpu.concatenate %67, %68 in 1 : vector<8x16xf32>, vector<8x496xf32> -> vector<8x512xf32>
    %70 = vector.broadcast %6 : vector<1x512xf32> to vector<8x512xf32>
    %71 = arith.mulf %69, %70 : vector<8x512xf32>
    %72 = vector.extract_strided_slice %60 {offsets = [0, 497], sizes = [8, 15], strides = [1, 1]} : vector<8x512xf32> to vector<8x15xf32>
    %73 = vector.extract_strided_slice %60 {offsets = [0, 0], sizes = [8, 497], strides = [1, 1]} : vector<8x512xf32> to vector<8x497xf32>
    %74 = tpu.concatenate %72, %73 in 1 : vector<8x15xf32>, vector<8x497xf32> -> vector<8x512xf32>
    %75 = vector.broadcast %7 : vector<1x512xf32> to vector<8x512xf32>
    %76 = arith.mulf %74, %75 : vector<8x512xf32>
    %77 = vector.extract_strided_slice %60 {offsets = [0, 511], sizes = [8, 1], strides = [1, 1]} : vector<8x512xf32> to vector<8x1xf32>
    %78 = vector.extract_strided_slice %60 {offsets = [0, 0], sizes = [8, 511], strides = [1, 1]} : vector<8x512xf32> to vector<8x511xf32>
    %79 = tpu.concatenate %77, %78 in 1 : vector<8x1xf32>, vector<8x511xf32> -> vector<8x512xf32>
    %80 = vector.broadcast %8 : vector<1x512xf32> to vector<8x512xf32>
    %81 = arith.mulf %79, %80 : vector<8x512xf32>
    %82 = vector.extract_strided_slice %60 {offsets = [0, 1], sizes = [8, 511], strides = [1, 1]} : vector<8x512xf32> to vector<8x511xf32>
    %83 = vector.extract_strided_slice %60 {offsets = [0, 0], sizes = [8, 1], strides = [1, 1]} : vector<8x512xf32> to vector<8x1xf32>
    %84 = tpu.concatenate %82, %83 in 1 : vector<8x511xf32>, vector<8x1xf32> -> vector<8x512xf32>
    %85 = vector.broadcast %9 : vector<1x512xf32> to vector<8x512xf32>
    %86 = arith.mulf %84, %85 : vector<8x512xf32>
    %87 = vector.extract_strided_slice %60 {offsets = [0, 15], sizes = [8, 497], strides = [1, 1]} : vector<8x512xf32> to vector<8x497xf32>
    %88 = vector.extract_strided_slice %60 {offsets = [0, 0], sizes = [8, 15], strides = [1, 1]} : vector<8x512xf32> to vector<8x15xf32>
    %89 = tpu.concatenate %87, %88 in 1 : vector<8x497xf32>, vector<8x15xf32> -> vector<8x512xf32>
    %90 = vector.broadcast %10 : vector<1x512xf32> to vector<8x512xf32>
    %91 = arith.mulf %89, %90 : vector<8x512xf32>
    %92 = vector.extract_strided_slice %60 {offsets = [0, 16], sizes = [8, 496], strides = [1, 1]} : vector<8x512xf32> to vector<8x496xf32>
    %93 = vector.extract_strided_slice %60 {offsets = [0, 0], sizes = [8, 16], strides = [1, 1]} : vector<8x512xf32> to vector<8x16xf32>
    %94 = tpu.concatenate %92, %93 in 1 : vector<8x496xf32>, vector<8x16xf32> -> vector<8x512xf32>
    %95 = vector.broadcast %11 : vector<1x512xf32> to vector<8x512xf32>
    %96 = arith.mulf %94, %95 : vector<8x512xf32>
    %97 = vector.extract_strided_slice %60 {offsets = [0, 17], sizes = [8, 495], strides = [1, 1]} : vector<8x512xf32> to vector<8x495xf32>
    %98 = vector.extract_strided_slice %60 {offsets = [0, 0], sizes = [8, 17], strides = [1, 1]} : vector<8x512xf32> to vector<8x17xf32>
    %99 = tpu.concatenate %97, %98 in 1 : vector<8x495xf32>, vector<8x17xf32> -> vector<8x512xf32>
    %100 = vector.broadcast %12 : vector<1x512xf32> to vector<8x512xf32>
    %101 = arith.mulf %99, %100 : vector<8x512xf32>
    %102 = tpu.concatenate %66, %71, %76, %81, %60, %86, %91, %96, %101 in 0 : vector<8x512xf32>, vector<8x512xf32>, vector<8x512xf32>, vector<8x512xf32>, vector<8x512xf32>, vector<8x512xf32>, vector<8x512xf32>, vector<8x512xf32>, vector<8x512xf32> -> vector<72x512xf32>
    %103 = arith.truncf %102 : vector<72x512xf32> to vector<72x512xbf16>
    %cst_11 = arith.constant dense<0.000000e+00> : vector<8x512xf32>
    %104 = tpu.matmul %61, %103, %cst_11 {dimension_numbers = #tpu.dot_dimension_numbers<[1], [0], [0], [1], [0, 0, 1, 1], [], []>} : vector<8x72xbf16>, vector<72x512xbf16>, vector<8x512xf32> -> vector<8x512xf32>
    %c0_12 = arith.constant 0 : index
    %c0_13 = arith.constant 0 : index
    %105 = vector.load %arg6[%c0_12, %c0_13] : memref<8x1xf32, #tpu.memory_space<vmem>>, vector<8x1xf32>
    %106 = vector.broadcast %105 : vector<8x1xf32> to vector<8x512xf32>
    %107 = arith.addf %104, %106 : vector<8x512xf32>
    %108 = vector.extract_strided_slice %107 {offsets = [0, 1], sizes = [8, 511], strides = [1, 1]} : vector<8x512xf32> to vector<8x511xf32>
    %109 = vector.extract_strided_slice %107 {offsets = [0, 0], sizes = [8, 1], strides = [1, 1]} : vector<8x512xf32> to vector<8x1xf32>
    %110 = tpu.concatenate %108, %109 in 1 : vector<8x511xf32>, vector<8x1xf32> -> vector<8x512xf32>
    %111 = vector.extract_strided_slice %107 {offsets = [0, 16], sizes = [8, 496], strides = [1, 1]} : vector<8x512xf32> to vector<8x496xf32>
    %112 = vector.extract_strided_slice %107 {offsets = [0, 0], sizes = [8, 16], strides = [1, 1]} : vector<8x512xf32> to vector<8x16xf32>
    %113 = tpu.concatenate %111, %112 in 1 : vector<8x496xf32>, vector<8x16xf32> -> vector<8x512xf32>
    %114 = vector.extract_strided_slice %107 {offsets = [0, 17], sizes = [8, 495], strides = [1, 1]} : vector<8x512xf32> to vector<8x495xf32>
    %115 = vector.extract_strided_slice %107 {offsets = [0, 0], sizes = [8, 17], strides = [1, 1]} : vector<8x512xf32> to vector<8x17xf32>
    %116 = tpu.concatenate %114, %115 in 1 : vector<8x495xf32>, vector<8x17xf32> -> vector<8x512xf32>
    %117 = tpu.concatenate %107, %110, %113, %116 in 0 : vector<8x512xf32>, vector<8x512xf32>, vector<8x512xf32>, vector<8x512xf32> -> vector<32x512xf32>
    %118 = arith.truncf %117 : vector<32x512xf32> to vector<32x512xbf16>
    %c0_14 = arith.constant 0 : index
    %c0_15 = arith.constant 0 : index
    %119 = vector.load %arg7[%c0_14, %c0_15] : memref<8x32xbf16, #tpu.memory_space<vmem>>, vector<8x32xbf16>
    %cst_16 = arith.constant dense<0.000000e+00> : vector<8x512xf32>
    %120 = tpu.matmul %119, %118, %cst_16 {dimension_numbers = #tpu.dot_dimension_numbers<[1], [0], [0], [1], [0, 0, 1, 1], [], []>} : vector<8x32xbf16>, vector<32x512xbf16>, vector<8x512xf32> -> vector<8x512xf32>
    %121 = arith.truncf %120 : vector<8x512xf32> to vector<8x512xbf16>
    %c0_17 = arith.constant 0 : index
    %c0_18 = arith.constant 0 : index
    %122 = vector.load %arg9[%c0_17, %c0_18] : memref<256x64xbf16, #tpu.memory_space<vmem>>, vector<256x64xbf16>
    %123 = vector.extract_strided_slice %121 {offsets = [0, 0], sizes = [8, 256], strides = [1, 1]} : vector<8x512xbf16> to vector<8x256xbf16>
    %cst_19 = arith.constant dense<0.000000e+00> : vector<8x64xf32>
    %124 = tpu.matmul %123, %122, %cst_19 {dimension_numbers = #tpu.dot_dimension_numbers<[1], [0], [0], [1], [0, 0, 1, 1], [], []>} : vector<8x256xbf16>, vector<256x64xbf16>, vector<8x64xf32> -> vector<8x64xf32>
    %125 = vector.extract_strided_slice %121 {offsets = [0, 256], sizes = [8, 256], strides = [1, 1]} : vector<8x512xbf16> to vector<8x256xbf16>
    %cst_20 = arith.constant dense<0.000000e+00> : vector<8x64xf32>
    %126 = tpu.matmul %125, %122, %cst_20 {dimension_numbers = #tpu.dot_dimension_numbers<[1], [0], [0], [1], [0, 0, 1, 1], [], []>} : vector<8x256xbf16>, vector<256x64xbf16>, vector<8x64xf32> -> vector<8x64xf32>
    %127 = tpu.concatenate %124, %126 in 1 : vector<8x64xf32>, vector<8x64xf32> -> vector<8x128xf32>
    %c0_21 = arith.constant 0 : index
    %c0_22 = arith.constant 0 : index
    %128 = vector.load %arg8[%c0_21, %c0_22] : memref<8x1xf32, #tpu.memory_space<vmem>>, vector<8x1xf32>
    %129 = vector.broadcast %128 : vector<8x1xf32> to vector<8x128xf32>
    %130 = arith.addf %127, %129 : vector<8x128xf32>
    %c0_23 = arith.constant 0 : index
    %c0_24 = arith.constant 0 : index
    %c0_25 = arith.constant 0 : index
    %131 = vector.load %arg10[%c0_23, %c0_24, %c0_25] : memref<1x8x128xf32, #tpu.memory_space<vmem>>, vector<1x8x128xf32>
    %132 = vector.shape_cast %131 : vector<1x8x128xf32> to vector<8x128xf32>
    %133 = vector.shape_cast %130 : vector<8x128xf32> to vector<1x8x128xf32>
    tpu.vector_store %arg10[%c0_23, %c0_24, %c0_25], %133 {strides = array<i32>} : memref<1x8x128xf32, #tpu.memory_space<vmem>>, vector<1x8x128xf32>,
    return
  }
  func.func @transform_0(%arg0: i32) -> (i32, i32, i32) {
    %c0_i32 = arith.constant 0 : i32
    %c0_i32_0 = arith.constant 0 : i32
    %c0_i32_1 = arith.constant 0 : i32
    return %arg0, %c0_i32, %c0_i32_0 : i32, i32, i32
  }
  func.func @transform_1(%arg0: i32) -> (i32, i32) {
    %c0_i32 = arith.constant 0 : i32
    %c0_i32_0 = arith.constant 0 : i32
    %c0_i32_1 = arith.constant 0 : i32
    return %c0_i32, %c0_i32_0 : i32, i32
  }
  func.func @transform_2(%arg0: i32) -> (i32, i32) {
    %c0_i32 = arith.constant 0 : i32
    %c0_i32_0 = arith.constant 0 : i32
    %c0_i32_1 = arith.constant 0 : i32
    return %c0_i32, %c0_i32_0 : i32, i32
  }
  func.func @transform_3(%arg0: i32) -> (i32, i32) {
    %c0_i32 = arith.constant 0 : i32
    %c0_i32_0 = arith.constant 0 : i32
    %c0_i32_1 = arith.constant 0 : i32
    return %c0_i32, %c0_i32_0 : i32, i32
  }
  func.func @transform_4(%arg0: i32) -> (i32, i32) {
    %c0_i32 = arith.constant 0 : i32
    %c0_i32_0 = arith.constant 0 : i32
    %c0_i32_1 = arith.constant 0 : i32
    return %c0_i32, %c0_i32_0 : i32, i32
  }
  func.func @transform_5(%arg0: i32) -> (i32, i32) {
    %c0_i32 = arith.constant 0 : i32
    %c0_i32_0 = arith.constant 0 : i32
    %c0_i32_1 = arith.constant 0 : i32
    return %c0_i32, %c0_i32_0 : i32, i32
  }
  func.func @transform_6(%arg0: i32) -> (i32, i32) {
    %c0_i32 = arith.constant 0 : i32
    %c0_i32_0 = arith.constant 0 : i32
    %c0_i32_1 = arith.constant 0 : i32
    return %c0_i32, %c0_i32_0 : i32, i32
  }
  func.func @transform_7(%arg0: i32) -> (i32, i32) {
    %c0_i32 = arith.constant 0 : i32
    %c0_i32_0 = arith.constant 0 : i32
    %c0_i32_1 = arith.constant 0 : i32
    return %c0_i32, %c0_i32_0 : i32, i32
  }
  func.func @transform_8(%arg0: i32) -> (i32, i32) {
    %c0_i32 = arith.constant 0 : i32
    %c0_i32_0 = arith.constant 0 : i32
    %c0_i32_1 = arith.constant 0 : i32
    return %c0_i32, %c0_i32_0 : i32, i32
  }
  func.func @transform_9(%arg0: i32) -> (i32, i32, i32) {
    %c0_i32 = arith.constant 0 : i32
    %c0_i32_0 = arith.constant 0 : i32
    %c0_i32_1 = arith.constant 0 : i32
    return %arg0, %c0_i32, %c0_i32_0 : i32, i32, i32
  }
}

</mosaic_0001>

<llo_original>
// kernel: tpu_custom_call.1
$region0: #{tpu_custom_call.1}
  #allocation0 [shape = 'u32[]', space=smem, size = 0x4, offset = 0x4, fixed_abs, tag = 'smem constant byte address 0x4 - core index']
  #allocation1 [shape = 'u32[72,128]{1,0:T(1,128)}', space=vmem, size = 0x9000, scoped, tag = 'internal scratch']
  %s0 = inlined_call_operand.vmem [shape: f32[1,8,512], index: 0, kind: input, shape index: {}]
  %s1 = inlined_call_operand.vmem [shape: f32[9,512], index: 1, kind: input, shape index: {}]
  %s2 = inlined_call_operand.vmem [shape: bf16[8,72], index: 2, kind: input, shape index: {}]
  %s3 = inlined_call_operand.vmem [shape: f32[8,1], index: 3, kind: input, shape index: {}]
  %s4 = inlined_call_operand.vmem [shape: bf16[8,72], index: 4, kind: input, shape index: {}]
  %s5 = inlined_call_operand.vmem [shape: f32[8,1], index: 5, kind: input, shape index: {}]
  %s6 = inlined_call_operand.vmem [shape: bf16[8,32], index: 6, kind: input, shape index: {}]
  %s7 = inlined_call_operand.vmem [shape: f32[8,1], index: 7, kind: input, shape index: {}]
  %s8 = inlined_call_operand.vmem [shape: bf16[256,64], index: 8, kind: input, shape index: {}]
  %s9 = inlined_call_operand.hbm [shape: f32[1,8,128], index: 9, kind: output, shape index: {}]
  %s10 = sld [smem:[#allocation0]]
  $region46: #{tpu_custom_call.1} parent=0
    _
  %s12 = ssub.s32 1, %s10
  %s13 = scalar_select 0, %s12, %s10
  $region1: #{tpu_custom_call.1} parent=0
    #allocation2 [shape = 'u8[4096]{0}', space=vmem, size = 0x1000, scoped, tag = 'output window, operand 0, single buffered']
    #allocation3 [shape = 's32[1]{0}', space=sflag, size = 0x4, scoped, tag = 'scoped memory for tpu_custom_call.1']
    %14 = vsyncpa [#allocation3], 0
    // Predicated region
    $region2: #{tpu_custom_call.1} parent=1 // pred_check
      _
    $region3: #{tpu_custom_call.1} parent=1 // pred_check_branch
      %16 = sbr.rel (0) target = $region5
    $region4: #{tpu_custom_call.1} parent=1 // pred_region
      _
    $region5: #{tpu_custom_call.1} parent=1 // pred_fallthru
      _
    // Predicated region
    $region6: #{tpu_custom_call.1} parent=1 // pred_check
      _
    $region7: #{tpu_custom_call.1} parent=1 // pred_check_branch
      %18 = sbr.rel (0) target = $region9
    $region8: #{tpu_custom_call.1} parent=1 // pred_region
      _
    $region9: #{tpu_custom_call.1} parent=1 // pred_fallthru
      _
    // Predicated region
    $region10: #{tpu_custom_call.1} parent=1 // pred_check
      _
    $region11: #{tpu_custom_call.1} parent=1 // pred_check_branch
      %20 = sbr.rel (0) target = $region13
    $region12: #{tpu_custom_call.1} parent=1 // pred_region
      _
    $region13: #{tpu_custom_call.1} parent=1 // pred_fallthru
      _
    // Predicated region
    $region14: #{tpu_custom_call.1} parent=1 // pred_check
      _
    $region15: #{tpu_custom_call.1} parent=1 // pred_check_branch
      %22 = sbr.rel (0) target = $region17
    $region16: #{tpu_custom_call.1} parent=1 // pred_region
      _
    $region17: #{tpu_custom_call.1} parent=1 // pred_fallthru
      _
    // Predicated region
    $region18: #{tpu_custom_call.1} parent=1 // pred_check
      _
    $region19: #{tpu_custom_call.1} parent=1 // pred_check_branch
      %24 = sbr.rel (0) target = $region21
    $region20: #{tpu_custom_call.1} parent=1 // pred_region
      _
    $region21: #{tpu_custom_call.1} parent=1 // pred_fallthru
      _
    // Predicated region
    $region22: #{tpu_custom_call.1} parent=1 // pred_check
      _
    $region23: #{tpu_custom_call.1} parent=1 // pred_check_branch
      %26 = sbr.rel (0) target = $region25
    $region24: #{tpu_custom_call.1} parent=1 // pred_region
      _
    $region25: #{tpu_custom_call.1} parent=1 // pred_fallthru
      _
    // Predicated region
    $region26: #{tpu_custom_call.1} parent=1 // pred_check
      _
    $region27: #{tpu_custom_call.1} parent=1 // pred_check_branch
      %28 = sbr.rel (0) target = $region29
    $region28: #{tpu_custom_call.1} parent=1 // pred_region
      _
    $region29: #{tpu_custom_call.1} parent=1 // pred_fallthru
      _
    // Predicated region
    $region30: #{tpu_custom_call.1} parent=1 // pred_check
      _
    $region31: #{tpu_custom_call.1} parent=1 // pred_check_branch
      %30 = sbr.rel (0) target = $region33
    $region32: #{tpu_custom_call.1} parent=1 // pred_region
      _
    $region33: #{tpu_custom_call.1} parent=1 // pred_fallthru
      _
    // Predicated region
    $region34: #{tpu_custom_call.1} parent=1 // pred_check
      _
    $region35: #{tpu_custom_call.1} parent=1 // pred_check_branch
      %32 = sbr.rel (0) target = $region37
    $region36: #{tpu_custom_call.1} parent=1 // pred_region
      _
    $region37: #{tpu_custom_call.1} parent=1 // pred_fallthru
      _
    %v34 = vld [vmem:[%s0] sm:$0xff]
    %v35 = vld [vmem:[%s0 + $0x8] sm:$0xff]
    %v36 = vld [vmem:[%s0 + $0x10] sm:$0xff]
    %v37 = vld [vmem:[%s0 + $0x18] sm:$0xff]
    %v38 = vmax.f32 %v34, 0.0
    %v39 = vmax.f32 %v35, 0.0
    %v40 = vmax.f32 %v36, 0.0
    %v41 = vmax.f32 %v37, 0.0
    %v42 = vld [vmem:[%s1] sm:$0xff]
    %v43 = vld [vmem:[%s1 + $0x8] sm:$0xff]
    %v44 = vld [vmem:[%s1 + $0x10] sm:$0xff]
    %v45 = vld [vmem:[%s1 + $0x18] sm:$0xff]
    %v46 = vld [vmem:[%s1 + $0x20] sm:$0x1]
    %v47 = vld [vmem:[%s1 + $0x28] sm:$0x1]
    %v48 = vld [vmem:[%s1 + $0x30] sm:$0x1]
    %v49 = vld [vmem:[%s1 + $0x38] sm:$0x1]
    %v50 = vld [vmem:[%s2] sm:$0xf]
    %52 = vrot.lane.b32.xlu0 %v37, 17
    %v53 = vpop.permute.xlu0 %52
    %58 = vrot.lane.b32.xlu0 %v34, 17
    %v59 = vpop.permute.xlu0 %58
    %60 = vrot.lane.b32.xlu0 %v35, 17
    %v61 = vpop.permute.xlu0 %60
    %62 = vrot.lane.b32.xlu0 %v36, 17
    %v63 = vpop.permute.xlu0 %62
    %vm64 = vcmask 138240
    %v65 = vsel %vm64, %v59, %v61
    %v66 = vsel %vm64, %v61, %v63
    %v67 = vsel %vm64, %v63, %v53
    %v72 = vsel %vm64, %v53, %v59
    %v73 = vperm.slane %v42, 0
    %v74 = vperm.slane %v43, 0
    %v75 = vperm.slane %v44, 0
    %v76 = vperm.slane %v45, 0
    %v77 = vmul.f32 %v72, %v73
    %v78 = vmul.f32 %v65, %v74
    %v79 = vmul.f32 %v66, %v75
    %v80 = vmul.f32 %v67, %v76
    %81 = vrot.lane.b32.xlu0 %v37, 16
    %v82 = vpop.permute.xlu0 %81
    %84 = vrot.lane.b32.xlu0 %v34, 16
    %v85 = vpop.permute.xlu0 %84
    %86 = vrot.lane.b32.xlu0 %v35, 16
    %v87 = vpop.permute.xlu0 %86
    %88 = vrot.lane.b32.xlu0 %v36, 16
    %v89 = vpop.permute.xlu0 %88
    %vm90 = vcmask 130048
    %v91 = vsel %vm90, %v85, %v87
    %v92 = vsel %vm90, %v87, %v89
    %v93 = vsel %vm90, %v89, %v82
    %v98 = vsel %vm90, %v82, %v85
    %v99 = vperm.slane %v42, 1
    %v100 = vperm.slane %v43, 1
    %v101 = vperm.slane %v44, 1
    %v102 = vperm.slane %v45, 1
    %v103 = vmul.f32 %v98, %v99
    %v104 = vmul.f32 %v91, %v100
    %v105 = vmul.f32 %v92, %v101
    %v106 = vmul.f32 %v93, %v102
    %107 = vrot.lane.b32.xlu0 %v37, 15
    %v108 = vpop.permute.xlu0 %107
    %110 = vrot.lane.b32.xlu0 %v34, 15
    %v111 = vpop.permute.xlu0 %110
    %112 = vrot.lane.b32.xlu0 %v35, 15
    %v113 = vpop.permute.xlu0 %112
    %114 = vrot.lane.b32.xlu0 %v36, 15
    %v115 = vpop.permute.xlu0 %114
    %vm116 = vcmask 121856
    %v117 = vsel %vm116, %v111, %v113
    %v118 = vsel %vm116, %v113, %v115
    %v119 = vsel %vm116, %v115, %v108
    %v124 = vsel %vm116, %v108, %v111
    %v125 = vperm.slane %v42, 2
    %v126 = vperm.slane %v43, 2
    %v127 = vperm.slane %v44, 2
    %v128 = vperm.slane %v45, 2
    %v129 = vmul.f32 %v124, %v125
    %v130 = vmul.f32 %v117, %v126
    %v131 = vmul.f32 %v118, %v127
    %v132 = vmul.f32 %v119, %v128
    %133 = vrot.lane.b32.xlu0 %v37, 1
    %v134 = vpop.permute.xlu0 %133
    %136 = vrot.lane.b32.xlu0 %v34, 1
    %v137 = vpop.permute.xlu0 %136
    %138 = vrot.lane.b32.xlu0 %v35, 1
    %v139 = vpop.permute.xlu0 %138
    %140 = vrot.lane.b32.xlu0 %v36, 1
    %v141 = vpop.permute.xlu0 %140
    %vm142 = vcmask 7168
    %v143 = vsel %vm142, %v137, %v139
    %v144 = vsel %vm142, %v139, %v141
    %v145 = vsel %vm142, %v141, %v134
    %v150 = vsel %vm142, %v134, %v137
    %v151 = vperm.slane %v42, 3
    %v152 = vperm.slane %v43, 3
    %v153 = vperm.slane %v44, 3
    %v154 = vperm.slane %v45, 3
    %v155 = vmul.f32 %v150, %v151
    %v156 = vmul.f32 %v143, %v152
    %v157 = vmul.f32 %v144, %v153
    %v158 = vmul.f32 %v145, %v154
    %159 = vrot.lane.b32.xlu0 %v34, 127
    %v160 = vpop.permute.xlu0 %159
    %161 = vrot.lane.b32.xlu0 %v35, 127
    %v162 = vpop.permute.xlu0 %161
    %163 = vrot.lane.b32.xlu0 %v36, 127
    %v164 = vpop.permute.xlu0 %163
    %165 = vrot.lane.b32.xlu0 %v37, 127
    %v166 = vpop.permute.xlu0 %165
    %vm167 = vcmask 1039360
    %v168 = vsel %vm167, %v160, %v162
    %v169 = vsel %vm167, %v162, %v164
    %v170 = vsel %vm167, %v164, %v166
    %v176 = vsel %vm167, %v166, %v160
    %v177 = vperm.slane %v42, 5
    %v178 = vperm.slane %v43, 5
    %v179 = vperm.slane %v44, 5
    %v180 = vperm.slane %v45, 5
    %v181 = vmul.f32 %v168, %v177
    %v182 = vmul.f32 %v169, %v178
    %v183 = vmul.f32 %v170, %v179
    %v184 = vmul.f32 %v176, %v180
    %185 = vrot.lane.b32.xlu0 %v34, 113
    %v186 = vpop.permute.xlu0 %185
    %187 = vrot.lane.b32.xlu0 %v35, 113
    %v188 = vpop.permute.xlu0 %187
    %189 = vrot.lane.b32.xlu0 %v36, 113
    %v190 = vpop.permute.xlu0 %189
    %191 = vrot.lane.b32.xlu0 %v37, 113
    %v192 = vpop.permute.xlu0 %191
    %vm193 = vcmask 924672
    %v194 = vsel %vm193, %v186, %v188
    %v195 = vsel %vm193, %v188, %v190
    %v196 = vsel %vm193, %v190, %v192
    %v202 = vsel %vm193, %v192, %v186
    %v203 = vperm.slane %v42, 6
    %v204 = vperm.slane %v43, 6
    %v205 = vperm.slane %v44, 6
    %v206 = vperm.slane %v45, 6
    %v207 = vmul.f32 %v194, %v203
    %v208 = vmul.f32 %v195, %v204
    %v209 = vmul.f32 %v196, %v205
    %v210 = vmul.f32 %v202, %v206
    %211 = vrot.lane.b32.xlu0 %v34, 112
    %v212 = vpop.permute.xlu0 %211
    %213 = vrot.lane.b32.xlu0 %v35, 112
    %v214 = vpop.permute.xlu0 %213
    %215 = vrot.lane.b32.xlu0 %v36, 112
    %v216 = vpop.permute.xlu0 %215
    %217 = vrot.lane.b32.xlu0 %v37, 112
    %v218 = vpop.permute.xlu0 %217
    %vm219 = vcmask 916480
    %v220 = vsel %vm219, %v212, %v214
    %v221 = vsel %vm219, %v214, %v216
    %v222 = vsel %vm219, %v216, %v218
    %v228 = vsel %vm219, %v218, %v212
    %v229 = vperm.slane %v42, 7
    %v230 = vperm.slane %v43, 7
    %v231 = vperm.slane %v44, 7
    %v232 = vperm.slane %v45, 7
    %v233 = vmul.f32 %v220, %v229
    %v234 = vmul.f32 %v221, %v230
    %v235 = vmul.f32 %v222, %v231
    %v236 = vmul.f32 %v228, %v232
    %237 = vrot.lane.b32.xlu0 %v34, 111
    %v238 = vpop.permute.xlu0 %237
    %239 = vrot.lane.b32.xlu0 %v35, 111
    %v240 = vpop.permute.xlu0 %239
    %241 = vrot.lane.b32.xlu0 %v36, 111
    %v242 = vpop.permute.xlu0 %241
    %243 = vrot.lane.b32.xlu0 %v37, 111
    %v244 = vpop.permute.xlu0 %243
    %vm245 = vcmask 908288
    %v246 = vsel %vm245, %v238, %v240
    %v247 = vsel %vm245, %v240, %v242
    %v248 = vsel %vm245, %v242, %v244
    %v254 = vsel %vm245, %v244, %v238
    %v255 = vperm.slane %v46, 0
    %v256 = vperm.slane %v47, 0
    %v257 = vperm.slane %v48, 0
    %v258 = vperm.slane %v49, 0
    %v259 = vmul.f32 %v246, %v255
    %v260 = vmul.f32 %v247, %v256
    %v261 = vmul.f32 %v248, %v257
    %v262 = vmul.f32 %v254, %v258
    %v263 = vpack.c.bf16 %v103, %v77
    %v264 = vpack.c.bf16 %v104, %v78
    %v265 = vpack.c.bf16 %v105, %v79
    %v266 = vpack.c.bf16 %v106, %v80
    %v267 = vpack.c.bf16 %v155, %v129
    %v268 = vpack.c.bf16 %v156, %v130
    %v269 = vpack.c.bf16 %v157, %v131
    %v270 = vpack.c.bf16 %v158, %v132
    %v271 = vpack.c.bf16 %v181, %v34
    %v272 = vpack.c.bf16 %v182, %v35
    %v273 = vpack.c.bf16 %v183, %v36
    %v274 = vpack.c.bf16 %v184, %v37
    %v275 = vpack.c.bf16 %v233, %v207
    %v276 = vpack.c.bf16 %v234, %v208
    %v277 = vpack.c.bf16 %v235, %v209
    %v278 = vpack.c.bf16 %v236, %v210
    %v279 = vpack.c.bf16 %v259, %v259
    %v280 = vpack.c.bf16 %v260, %v260
    %v281 = vpack.c.bf16 %v261, %v261
    %v282 = vpack.c.bf16 %v262, %v262
    %v283 = vld [vmem:[%s3] sm:$0xff]
    %285 = vset.pattern.permute.xlu0 0
    %286 = vperm.xlu0 %285, %v283
    %v287 = vpop.permute.xlu0 %286
    %vm289 = vcmask 588800
    %v291 = vsel %vm289, %v50, 0
    %vm293 = vcmask 1043456
    %v295 = vsel %vm293, %v279, 0
    %v298 = vsel %vm293, %v280, 0
    %v301 = vsel %vm293, %v281, 0
    %v304 = vsel %vm293, %v282, 0
    %306 = vmatpush.bf16.msra.mxu0 0
    %307 = vmatpush.bf16.msra.mxu0 0
    %308 = vmatpush.bf16.msra.mxu0 0
    %309 = vmatpush.bf16.msra.mxu0 %v295
    %310 = vmatpush.bf16.msra.mxu0 %v275
    %311 = vmatpush.bf16.msra.mxu0 %v271
    %312 = vmatpush.bf16.msra.mxu0 %v267
    %313 = vmatpush.bf16.msra.mxu0 %v263
    %314 = vmatmul.bf16.gmra.mxu0 %v291
    %v315 = vpop.f32.mrf.mxu0
    %v316 = vadd.f32 %v287, %v315
    %v317 = vpop.f32.mrf.mxu0
    %318 = vdwg.mxu0
    %319 = vmatpush.bf16.msra.mxu0 0
    %320 = vmatpush.bf16.msra.mxu0 0
    %321 = vmatpush.bf16.msra.mxu0 0
    %322 = vmatpush.bf16.msra.mxu0 %v298
    %323 = vmatpush.bf16.msra.mxu0 %v276
    %324 = vmatpush.bf16.msra.mxu0 %v272
    %325 = vmatpush.bf16.msra.mxu0 %v268
    %326 = vmatpush.bf16.msra.mxu0 %v264
    %327 = vmatmul.bf16.gmra.mxu0 %v291
    %v328 = vpop.f32.mrf.mxu0
    %v329 = vadd.f32 %v287, %v328
    %v330 = vpop.f32.mrf.mxu0
    %331 = vdwg.mxu0
    %332 = vmatpush.bf16.msra.mxu0 0
    %333 = vmatpush.bf16.msra.mxu0 0
    %334 = vmatpush.bf16.msra.mxu0 0
    %335 = vmatpush.bf16.msra.mxu0 %v301
    %336 = vmatpush.bf16.msra.mxu0 %v277
    %337 = vmatpush.bf16.msra.mxu0 %v273
    %338 = vmatpush.bf16.msra.mxu0 %v269
    %339 = vmatpush.bf16.msra.mxu0 %v265
    %340 = vmatmul.bf16.gmra.mxu0 %v291
    %v341 = vpop.f32.mrf.mxu0
    %v342 = vadd.f32 %v287, %v341
    %v343 = vpop.f32.mrf.mxu0
    %344 = vdwg.mxu0
    %345 = vmatpush.bf16.msra.mxu0 0
    %346 = vmatpush.bf16.msra.mxu0 0
    %347 = vmatpush.bf16.msra.mxu0 0
    %348 = vmatpush.bf16.msra.mxu0 %v304
    %349 = vmatpush.bf16.msra.mxu0 %v278
    %350 = vmatpush.bf16.msra.mxu0 %v274
    %351 = vmatpush.bf16.msra.mxu0 %v270
    %352 = vmatpush.bf16.msra.mxu0 %v266
    %353 = vmatmul.bf16.gmra.mxu0 %v291
    %v354 = vpop.f32.mrf.mxu0
    %v355 = vadd.f32 %v287, %v354
    %v356 = vpop.f32.mrf.mxu0
    %357 = vdwg.mxu0
    %v358 = vadd.f32 %v316, %v38
    %v359 = vadd.f32 %v329, %v39
    %v360 = vadd.f32 %v342, %v40
    %v361 = vadd.f32 %v355, %v41
    %v362 = vld [vmem:[%s4] sm:$0xf]
    %364 = vrot.lane.b32.xlu0 %v361, 17
    %v365 = vpop.permute.xlu0 %364
    %370 = vrot.lane.b32.xlu0 %v358, 17
    %v371 = vpop.permute.xlu0 %370
    %372 = vrot.lane.b32.xlu0 %v359, 17
    %v373 = vpop.permute.xlu0 %372
    %374 = vrot.lane.b32.xlu0 %v360, 17
    %v375 = vpop.permute.xlu0 %374
    %v376 = vsel %vm64, %v371, %v373
    %v377 = vsel %vm64, %v373, %v375
    %v378 = vsel %vm64, %v375, %v365
    %v383 = vsel %vm64, %v365, %v371
    %v384 = vmul.f32 %v383, %v73
    %v385 = vmul.f32 %v376, %v74
    %v386 = vmul.f32 %v377, %v75
    %v387 = vmul.f32 %v378, %v76
    %388 = vrot.lane.b32.xlu0 %v361, 16
    %v389 = vpop.permute.xlu0 %388
    %391 = vrot.lane.b32.xlu0 %v358, 16
    %v392 = vpop.permute.xlu0 %391
    %393 = vrot.lane.b32.xlu0 %v359, 16
    %v394 = vpop.permute.xlu0 %393
    %395 = vrot.lane.b32.xlu0 %v360, 16
    %v396 = vpop.permute.xlu0 %395
    %v397 = vsel %vm90, %v392, %v394
    %v398 = vsel %vm90, %v394, %v396
    %v399 = vsel %vm90, %v396, %v389
    %v404 = vsel %vm90, %v389, %v392
    %v405 = vmul.f32 %v404, %v99
    %v406 = vmul.f32 %v397, %v100
    %v407 = vmul.f32 %v398, %v101
    %v408 = vmul.f32 %v399, %v102
    %409 = vrot.lane.b32.xlu0 %v361, 15
    %v410 = vpop.permute.xlu0 %409
    %412 = vrot.lane.b32.xlu0 %v358, 15
    %v413 = vpop.permute.xlu0 %412
    %414 = vrot.lane.b32.xlu0 %v359, 15
    %v415 = vpop.permute.xlu0 %414
    %416 = vrot.lane.b32.xlu0 %v360, 15
    %v417 = vpop.permute.xlu0 %416
    %v418 = vsel %vm116, %v413, %v415
    %v419 = vsel %vm116, %v415, %v417
    %v420 = vsel %vm116, %v417, %v410
    %v425 = vsel %vm116, %v410, %v413
    %v426 = vmul.f32 %v425, %v125
    %v427 = vmul.f32 %v418, %v126
    %v428 = vmul.f32 %v419, %v127
    %v429 = vmul.f32 %v420, %v128
    %430 = vrot.lane.b32.xlu0 %v361, 1
    %v431 = vpop.permute.xlu0 %430
    %433 = vrot.lane.b32.xlu0 %v358, 1
    %v434 = vpop.permute.xlu0 %433
    %435 = vrot.lane.b32.xlu0 %v359, 1
    %v436 = vpop.permute.xlu0 %435
    %437 = vrot.lane.b32.xlu0 %v360, 1
    %v438 = vpop.permute.xlu0 %437
    %v439 = vsel %vm142, %v434, %v436
    %v440 = vsel %vm142, %v436, %v438
    %v441 = vsel %vm142, %v438, %v431
    %v446 = vsel %vm142, %v431, %v434
    %v447 = vmul.f32 %v446, %v151
    %v448 = vmul.f32 %v439, %v152
    %v449 = vmul.f32 %v440, %v153
    %v450 = vmul.f32 %v441, %v154
    %451 = vrot.lane.b32.xlu0 %v358, 127
    %v452 = vpop.permute.xlu0 %451
    %453 = vrot.lane.b32.xlu0 %v359, 127
    %v454 = vpop.permute.xlu0 %453
    %455 = vrot.lane.b32.xlu0 %v360, 127
    %v456 = vpop.permute.xlu0 %455
    %457 = vrot.lane.b32.xlu0 %v361, 127
    %v458 = vpop.permute.xlu0 %457
    %v459 = vsel %vm167, %v452, %v454
    %v460 = vsel %vm167, %v454, %v456
    %v461 = vsel %vm167, %v456, %v458
    %v467 = vsel %vm167, %v458, %v452
    %v468 = vmul.f32 %v459, %v177
    %v469 = vmul.f32 %v460, %v178
    %v470 = vmul.f32 %v461, %v179
    %v471 = vmul.f32 %v467, %v180
    %472 = vrot.lane.b32.xlu0 %v358, 113
    %v473 = vpop.permute.xlu0 %472
    %474 = vrot.lane.b32.xlu0 %v359, 113
    %v475 = vpop.permute.xlu0 %474
    %476 = vrot.lane.b32.xlu0 %v360, 113
    %v477 = vpop.permute.xlu0 %476
    %478 = vrot.lane.b32.xlu0 %v361, 113
    %v479 = vpop.permute.xlu0 %478
    %v480 = vsel %vm193, %v473, %v475
    %v481 = vsel %vm193, %v475, %v477
    %v482 = vsel %vm193, %v477, %v479
    %v488 = vsel %vm193, %v479, %v473
    %v489 = vmul.f32 %v480, %v203
    %v490 = vmul.f32 %v481, %v204
    %v491 = vmul.f32 %v482, %v205
    %v492 = vmul.f32 %v488, %v206
    %493 = vrot.lane.b32.xlu0 %v358, 112
    %v494 = vpop.permute.xlu0 %493
    %495 = vrot.lane.b32.xlu0 %v359, 112
    %v496 = vpop.permute.xlu0 %495
    %497 = vrot.lane.b32.xlu0 %v360, 112
    %v498 = vpop.permute.xlu0 %497
    %499 = vrot.lane.b32.xlu0 %v361, 112
    %v500 = vpop.permute.xlu0 %499
    %v501 = vsel %vm219, %v494, %v496
    %v502 = vsel %vm219, %v496, %v498
    %v503 = vsel %vm219, %v498, %v500
    %v509 = vsel %vm219, %v500, %v494
    %v510 = vmul.f32 %v501, %v229
    %v511 = vmul.f32 %v502, %v230
    %v512 = vmul.f32 %v503, %v231
    %v513 = vmul.f32 %v509, %v232
    %514 = vrot.lane.b32.xlu0 %v358, 111
    %v515 = vpop.permute.xlu0 %514
    %516 = vrot.lane.b32.xlu0 %v359, 111
    %v517 = vpop.permute.xlu0 %516
    %518 = vrot.lane.b32.xlu0 %v360, 111
    %v519 = vpop.permute.xlu0 %518
    %520 = vrot.lane.b32.xlu0 %v361, 111
    %v521 = vpop.permute.xlu0 %520
    %v522 = vsel %vm245, %v515, %v517
    %v523 = vsel %vm245, %v517, %v519
    %v524 = vsel %vm245, %v519, %v521
    %v530 = vsel %vm245, %v521, %v515
    %v531 = vmul.f32 %v522, %v255
    %v532 = vmul.f32 %v523, %v256
    %v533 = vmul.f32 %v524, %v257
    %v534 = vmul.f32 %v530, %v258
    %v535 = vpack.c.bf16 %v405, %v384
    %v536 = vpack.c.bf16 %v406, %v385
    %v537 = vpack.c.bf16 %v407, %v386
    %v538 = vpack.c.bf16 %v408, %v387
    %v539 = vpack.c.bf16 %v447, %v426
    %v540 = vpack.c.bf16 %v448, %v427
    %v541 = vpack.c.bf16 %v449, %v428
    %v542 = vpack.c.bf16 %v450, %v429
    %v543 = vpack.c.bf16 %v468, %v358
    %v544 = vpack.c.bf16 %v469, %v359
    %v545 = vpack.c.bf16 %v470, %v360
    %v546 = vpack.c.bf16 %v471, %v361
    %v547 = vpack.c.bf16 %v510, %v489
    %v548 = vpack.c.bf16 %v511, %v490
    %v549 = vpack.c.bf16 %v512, %v491
    %v550 = vpack.c.bf16 %v513, %v492
    %v551 = vpack.c.bf16 %v531, %v531
    %v552 = vpack.c.bf16 %v532, %v532
    %v553 = vpack.c.bf16 %v533, %v533
    %v554 = vpack.c.bf16 %v534, %v534
    %v555 = vld [vmem:[%s5] sm:$0xff]
    %557 = vset.pattern.permute.xlu0 0
    %558 = vperm.xlu0 %557, %v555
    %v559 = vpop.permute.xlu0 %558
    %v562 = vsel %vm289, %v362, 0
    %v565 = vsel %vm293, %v551, 0
    %v568 = vsel %vm293, %v552, 0
    %v571 = vsel %vm293, %v553, 0
    %v574 = vsel %vm293, %v554, 0
    %576 = vmatpush.bf16.msra.mxu0 0
    %577 = vmatpush.bf16.msra.mxu0 0
    %578 = vmatpush.bf16.msra.mxu0 0
    %579 = vmatpush.bf16.msra.mxu0 %v565
    %580 = vmatpush.bf16.msra.mxu0 %v547
    %581 = vmatpush.bf16.msra.mxu0 %v543
    %582 = vmatpush.bf16.msra.mxu0 %v539
    %583 = vmatpush.bf16.msra.mxu0 %v535
    %584 = vmatmul.bf16.gmra.mxu0 %v562
    %v585 = vpop.f32.mrf.mxu0
    %v586 = vadd.f32 %v559, %v585
    %v587 = vpop.f32.mrf.mxu0
    %588 = vdwg.mxu0
    %589 = vmatpush.bf16.msra.mxu0 0
    %590 = vmatpush.bf16.msra.mxu0 0
    %591 = vmatpush.bf16.msra.mxu0 0
    %592 = vmatpush.bf16.msra.mxu0 %v568
    %593 = vmatpush.bf16.msra.mxu0 %v548
    %594 = vmatpush.bf16.msra.mxu0 %v544
    %595 = vmatpush.bf16.msra.mxu0 %v540
    %596 = vmatpush.bf16.msra.mxu0 %v536
    %597 = vmatmul.bf16.gmra.mxu0 %v562
    %v598 = vpop.f32.mrf.mxu0
    %v599 = vadd.f32 %v559, %v598
    %v600 = vpop.f32.mrf.mxu0
    %601 = vdwg.mxu0
    %602 = vmatpush.bf16.msra.mxu0 0
    %603 = vmatpush.bf16.msra.mxu0 0
    %604 = vmatpush.bf16.msra.mxu0 0
    %605 = vmatpush.bf16.msra.mxu0 %v571
    %606 = vmatpush.bf16.msra.mxu0 %v549
    %607 = vmatpush.bf16.msra.mxu0 %v545
    %608 = vmatpush.bf16.msra.mxu0 %v541
    %609 = vmatpush.bf16.msra.mxu0 %v537
    %610 = vmatmul.bf16.gmra.mxu0 %v562
    %v611 = vpop.f32.mrf.mxu0
    %v612 = vadd.f32 %v559, %v611
    %v613 = vpop.f32.mrf.mxu0
    %614 = vdwg.mxu0
    %615 = vmatpush.bf16.msra.mxu0 0
    %616 = vmatpush.bf16.msra.mxu0 0
    %617 = vmatpush.bf16.msra.mxu0 0
    %618 = vmatpush.bf16.msra.mxu0 %v574
    %619 = vmatpush.bf16.msra.mxu0 %v550
    %620 = vmatpush.bf16.msra.mxu0 %v546
    %621 = vmatpush.bf16.msra.mxu0 %v542
    %622 = vmatpush.bf16.msra.mxu0 %v538
    %623 = vmatmul.bf16.gmra.mxu0 %v562
    %v624 = vpop.f32.mrf.mxu0
    %v625 = vadd.f32 %v559, %v624
    %v626 = vpop.f32.mrf.mxu0
    %627 = vdwg.mxu0
    %632 = vrot.lane.b32.xlu0 %v586, 127
    %v633 = vpop.permute.xlu0 %632
    %634 = vrot.lane.b32.xlu0 %v599, 127
    %v635 = vpop.permute.xlu0 %634
    %636 = vrot.lane.b32.xlu0 %v612, 127
    %v637 = vpop.permute.xlu0 %636
    %638 = vrot.lane.b32.xlu0 %v625, 127
    %v639 = vpop.permute.xlu0 %638
    %v640 = vsel %vm167, %v633, %v635
    %v641 = vsel %vm167, %v635, %v637
    %v642 = vsel %vm167, %v637, %v639
    %v648 = vsel %vm167, %v639, %v633
    %649 = vrot.lane.b32.xlu0 %v586, 112
    %v650 = vpop.permute.xlu0 %649
    %651 = vrot.lane.b32.xlu0 %v599, 112
    %v652 = vpop.permute.xlu0 %651
    %653 = vrot.lane.b32.xlu0 %v612, 112
    %v654 = vpop.permute.xlu0 %653
    %655 = vrot.lane.b32.xlu0 %v625, 112
    %v656 = vpop.permute.xlu0 %655
    %v657 = vsel %vm219, %v650, %v652
    %v658 = vsel %vm219, %v652, %v654
    %v659 = vsel %vm219, %v654, %v656
    %v665 = vsel %vm219, %v656, %v650
    %666 = vrot.lane.b32.xlu0 %v586, 111
    %v667 = vpop.permute.xlu0 %666
    %668 = vrot.lane.b32.xlu0 %v599, 111
    %v669 = vpop.permute.xlu0 %668
    %670 = vrot.lane.b32.xlu0 %v612, 111
    %v671 = vpop.permute.xlu0 %670
    %672 = vrot.lane.b32.xlu0 %v625, 111
    %v673 = vpop.permute.xlu0 %672
    %v674 = vsel %vm245, %v667, %v669
    %v675 = vsel %vm245, %v669, %v671
    %v676 = vsel %vm245, %v671, %v673
    %v682 = vsel %vm245, %v673, %v667
    %v683 = vpack.c.bf16 %v640, %v586
    %v684 = vpack.c.bf16 %v641, %v599
    %v685 = vpack.c.bf16 %v642, %v612
    %v686 = vpack.c.bf16 %v648, %v625
    %v687 = vpack.c.bf16 %v674, %v657
    %v688 = vpack.c.bf16 %v675, %v658
    %v689 = vpack.c.bf16 %v676, %v659
    %v690 = vpack.c.bf16 %v682, %v665
    %v691 = vld [vmem:[%s6] sm:$0xf]
    %vm692 = vcmask 261120
    %v694 = vsel %vm692, %v691, 0
    %696 = vmatpush.bf16.msra.mxu0 0
    %697 = vmatpush.bf16.msra.mxu0 0
    %698 = vmatpush.bf16.msra.mxu0 0
    %699 = vmatpush.bf16.msra.mxu0 0
    %700 = vmatpush.bf16.msra.mxu0 0
    %701 = vmatpush.bf16.msra.mxu0 0
    %702 = vmatpush.bf16.msra.mxu0 %v687
    %703 = vmatpush.bf16.msra.mxu0 %v683
    %704 = vmatmul.bf16.gmra.mxu0 %v694
    %v705 = vpop.f32.mrf.mxu0
    %v706 = vadd.f32 0.0, %v705
    %v707 = vpop.f32.mrf.mxu0
    %708 = vdwg.mxu0
    %709 = vmatpush.bf16.msra.mxu0 0
    %710 = vmatpush.bf16.msra.mxu0 0
    %711 = vmatpush.bf16.msra.mxu0 0
    %712 = vmatpush.bf16.msra.mxu0 0
    %713 = vmatpush.bf16.msra.mxu0 0
    %714 = vmatpush.bf16.msra.mxu0 0
    %715 = vmatpush.bf16.msra.mxu0 %v688
    %716 = vmatpush.bf16.msra.mxu0 %v684
    %717 = vmatmul.bf16.gmra.mxu0 %v694
    %v718 = vpop.f32.mrf.mxu0
    %v719 = vadd.f32 0.0, %v718
    %v720 = vpop.f32.mrf.mxu0
    %721 = vdwg.mxu0
    %722 = vmatpush.bf16.msra.mxu0 0
    %723 = vmatpush.bf16.msra.mxu0 0
    %724 = vmatpush.bf16.msra.mxu0 0
    %725 = vmatpush.bf16.msra.mxu0 0
    %726 = vmatpush.bf16.msra.mxu0 0
    %727 = vmatpush.bf16.msra.mxu0 0
    %728 = vmatpush.bf16.msra.mxu0 %v689
    %729 = vmatpush.bf16.msra.mxu0 %v685
    %730 = vmatmul.bf16.gmra.mxu0 %v694
    %v731 = vpop.f32.mrf.mxu0
    %v732 = vadd.f32 0.0, %v731
    %v733 = vpop.f32.mrf.mxu0
    %734 = vdwg.mxu0
    %735 = vmatpush.bf16.msra.mxu0 0
    %736 = vmatpush.bf16.msra.mxu0 0
    %737 = vmatpush.bf16.msra.mxu0 0
    %738 = vmatpush.bf16.msra.mxu0 0
    %739 = vmatpush.bf16.msra.mxu0 0
    %740 = vmatpush.bf16.msra.mxu0 0
    %741 = vmatpush.bf16.msra.mxu0 %v690
    %742 = vmatpush.bf16.msra.mxu0 %v686
    %743 = vmatmul.bf16.gmra.mxu0 %v694
    %v744 = vpop.f32.mrf.mxu0
    %v745 = vadd.f32 0.0, %v744
    %v746 = vpop.f32.mrf.mxu0
    %747 = vdwg.mxu0
    %v748 = vpack.c.bf16 %v719, %v706
    %v749 = vpack.c.bf16 %v745, %v732
    %v750 = vld [vmem:[%s8] sm:$0xf]
    %v751 = vld [vmem:[%s8 + $0x4] sm:$0xf]
    %v752 = vld [vmem:[%s8 + $0x8] sm:$0xf]
    %v753 = vld [vmem:[%s8 + $0xc] sm:$0xf]
    %v754 = vld [vmem:[%s8 + $0x10] sm:$0xf]
    %v755 = vld [vmem:[%s8 + $0x14] sm:$0xf]
    %v756 = vld [vmem:[%s8 + $0x18] sm:$0xf]
    %v757 = vld [vmem:[%s8 + $0x1c] sm:$0xf]
    %v758 = vld [vmem:[%s8 + $0x20] sm:$0xf]
    %v759 = vld [vmem:[%s8 + $0x24] sm:$0xf]
    %v760 = vld [vmem:[%s8 + $0x28] sm:$0xf]
    %v761 = vld [vmem:[%s8 + $0x2c] sm:$0xf]
    %v762 = vld [vmem:[%s8 + $0x30] sm:$0xf]
    %v763 = vld [vmem:[%s8 + $0x34] sm:$0xf]
    %v764 = vld [vmem:[%s8 + $0x38] sm:$0xf]
    %v765 = vld [vmem:[%s8 + $0x3c] sm:$0xf]
    %v766 = vld [vmem:[%s8 + $0x40] sm:$0xf]
    %v767 = vld [vmem:[%s8 + $0x44] sm:$0xf]
    %v768 = vld [vmem:[%s8 + $0x48] sm:$0xf]
    %v769 = vld [vmem:[%s8 + $0x4c] sm:$0xf]
    %v770 = vld [vmem:[%s8 + $0x50] sm:$0xf]
    %v771 = vld [vmem:[%s8 + $0x54] sm:$0xf]
    %v772 = vld [vmem:[%s8 + $0x58] sm:$0xf]
    %v773 = vld [vmem:[%s8 + $0x5c] sm:$0xf]
    %v774 = vld [vmem:[%s8 + $0x60] sm:$0xf]
    %v775 = vld [vmem:[%s8 + $0x64] sm:$0xf]
    %v776 = vld [vmem:[%s8 + $0x68] sm:$0xf]
    %v777 = vld [vmem:[%s8 + $0x6c] sm:$0xf]
    %v778 = vld [vmem:[%s8 + $0x70] sm:$0xf]
    %v779 = vld [vmem:[%s8 + $0x74] sm:$0xf]
    %v780 = vld [vmem:[%s8 + $0x78] sm:$0xf]
    %v781 = vld [vmem:[%s8 + $0x7c] sm:$0xf]
    %v783 = vunpack.c.l.b16 %v748
    %v784 = vunpack.c.h.b16 %v748
    %v785 = vpack.c.b16 %v783, %v783
    %v786 = vpack.c.b16 %v784, %v784
    %v821 = vunpack.c.l.b16 %v750
    %v822 = vunpack.c.l.b16 %v751
    %v823 = vunpack.c.l.b16 %v752
    %v824 = vunpack.c.l.b16 %v753
    %v825 = vunpack.c.l.b16 %v754
    %v826 = vunpack.c.l.b16 %v755
    %v827 = vunpack.c.l.b16 %v756
    %v828 = vunpack.c.l.b16 %v757
    %v829 = vunpack.c.l.b16 %v758
    %v830 = vunpack.c.l.b16 %v759
    %v831 = vunpack.c.l.b16 %v760
    %v832 = vunpack.c.l.b16 %v761
    %v833 = vunpack.c.l.b16 %v762
    %v834 = vunpack.c.l.b16 %v763
    %v835 = vunpack.c.l.b16 %v764
    %v836 = vunpack.c.l.b16 %v765
    %v837 = vunpack.c.l.b16 %v766
    %v838 = vunpack.c.l.b16 %v767
    %v839 = vunpack.c.l.b16 %v768
    %v840 = vunpack.c.l.b16 %v769
    %v841 = vunpack.c.l.b16 %v770
    %v842 = vunpack.c.l.b16 %v771
    %v843 = vunpack.c.l.b16 %v772
    %v844 = vunpack.c.l.b16 %v773
    %v845 = vunpack.c.l.b16 %v774
    %v846 = vunpack.c.l.b16 %v775
    %v847 = vunpack.c.l.b16 %v776
    %v848 = vunpack.c.l.b16 %v777
    %v849 = vunpack.c.l.b16 %v778
    %v850 = vunpack.c.l.b16 %v779
    %v851 = vunpack.c.l.b16 %v780
    %v852 = vunpack.c.l.b16 %v781
    %v853 = vpack.c.b16 %v822, %v821
    %v854 = vpack.c.b16 %v824, %v823
    %v855 = vpack.c.b16 %v826, %v825
    %v856 = vpack.c.b16 %v828, %v827
    %v857 = vpack.c.b16 %v830, %v829
    %v858 = vpack.c.b16 %v832, %v831
    %v859 = vpack.c.b16 %v834, %v833
    %v860 = vpack.c.b16 %v836, %v835
    %v861 = vpack.c.b16 %v838, %v837
    %v862 = vpack.c.b16 %v840, %v839
    %v863 = vpack.c.b16 %v842, %v841
    %v864 = vpack.c.b16 %v844, %v843
    %v865 = vpack.c.b16 %v846, %v845
    %v866 = vpack.c.b16 %v848, %v847
    %v867 = vpack.c.b16 %v850, %v849
    %v868 = vpack.c.b16 %v852, %v851
    %885 = vmatpush.bf16.msra.mxu0 %v860
    %886 = vmatpush.bf16.msra.mxu0 %v859
    %887 = vmatpush.bf16.msra.mxu0 %v858
    %888 = vmatpush.bf16.msra.mxu0 %v857
    %889 = vmatpush.bf16.msra.mxu0 %v856
    %890 = vmatpush.bf16.msra.mxu0 %v855
    %891 = vmatpush.bf16.msra.mxu0 %v854
    %892 = vmatpush.bf16.msra.mxu0 %v853
    %893 = vmatmul.bf16.gmra.mxu0 %v785
    %v894 = vpop.f32.mrf.mxu0
    %v895 = vadd.f32 0.0, %v894
    %v896 = vpop.f32.mrf.mxu0
    %897 = vdwg.mxu0
    %898 = vmatpush.bf16.msra.mxu0 %v868
    %899 = vmatpush.bf16.msra.mxu0 %v867
    %900 = vmatpush.bf16.msra.mxu0 %v866
    %901 = vmatpush.bf16.msra.mxu0 %v865
    %902 = vmatpush.bf16.msra.mxu0 %v864
    %903 = vmatpush.bf16.msra.mxu0 %v863
    %904 = vmatpush.bf16.msra.mxu0 %v862
    %905 = vmatpush.bf16.msra.mxu0 %v861
    %906 = vmatmul.bf16.gmra.mxu0 %v786
    %v907 = vpop.f32.mrf.mxu0
    %v908 = vadd.f32 %v895, %v907
    %v909 = vpop.f32.mrf.mxu0
    %910 = vdwg.mxu0
    %v912 = vunpack.c.l.b16 %v749
    %v913 = vunpack.c.h.b16 %v749
    %v914 = vpack.c.b16 %v912, %v912
    %v915 = vpack.c.b16 %v913, %v913
    %918 = vmatpush.bf16.msra.mxu0 %v860
    %919 = vmatpush.bf16.msra.mxu0 %v859
    %920 = vmatpush.bf16.msra.mxu0 %v858
    %921 = vmatpush.bf16.msra.mxu0 %v857
    %922 = vmatpush.bf16.msra.mxu0 %v856
    %923 = vmatpush.bf16.msra.mxu0 %v855
    %924 = vmatpush.bf16.msra.mxu0 %v854
    %925 = vmatpush.bf16.msra.mxu0 %v853
    %926 = vmatmul.bf16.gmra.mxu0 %v914
    %v927 = vpop.f32.mrf.mxu0
    %v928 = vadd.f32 0.0, %v927
    %v929 = vpop.f32.mrf.mxu0
    %930 = vdwg.mxu0
    %931 = vmatpush.bf16.msra.mxu0 %v868
    %932 = vmatpush.bf16.msra.mxu0 %v867
    %933 = vmatpush.bf16.msra.mxu0 %v866
    %934 = vmatpush.bf16.msra.mxu0 %v865
    %935 = vmatpush.bf16.msra.mxu0 %v864
    %936 = vmatpush.bf16.msra.mxu0 %v863
    %937 = vmatpush.bf16.msra.mxu0 %v862
    %938 = vmatpush.bf16.msra.mxu0 %v861
    %939 = vmatmul.bf16.gmra.mxu0 %v915
    %v940 = vpop.f32.mrf.mxu0
    %v941 = vadd.f32 %v928, %v940
    %v942 = vpop.f32.mrf.mxu0
    %943 = vdwg.mxu0
    %945 = vrot.lane.b32.xlu0 %v941, 64
    %v946 = vpop.permute.xlu0 %945
    %vm948 = vcmask 523264
    %v949 = vsel %vm948, %v908, %v946
    %v950 = vld [vmem:[%s7] sm:$0xff]
    %952 = vset.pattern.permute.xlu0 0
    %953 = vperm.xlu0 %952, %v950
    %v954 = vpop.permute.xlu0 %953
    %v956 = vadd.f32 %v949, %v954
    %957 = vst [vmem:[#allocation2] sm:$0xff] %v956
    // Predicated region
    $region38: #{tpu_custom_call.1} parent=1 // pred_check
      _
    $region39: #{tpu_custom_call.1} parent=1 // pred_check_branch
      %959 = sbr.rel (0) target = $region41
    $region40: #{tpu_custom_call.1} parent=1 // pred_region
      %961 = vsyncadd [#allocation3], 0
      %s963 = sshll.u32 [#allocation2], 4
      %s964 = int_to_ptr.vmem [resolvable:$true] %s963
      %s965 = sshll.u32 %s9, 4
      %s966 = int_to_ptr.hbm [resolvable:$true] %s965
      %968 = dma.vmem_to_hbm [thread:$0]  %s964, 128, %s966, [#allocation3]
    $region41: #{tpu_custom_call.1} parent=1 // pred_fallthru
      _
    // Predicated region
    $region42: #{tpu_custom_call.1} parent=1 // pred_check
      _
    $region43: #{tpu_custom_call.1} parent=1 // pred_check_branch
      %970 = sbr.rel (0) target = $region45
    $region44: #{tpu_custom_call.1} parent=1 // pred_region
      %972 = dma.done [#allocation3], 128
    $region45: #{tpu_custom_call.1} parent=1 // pred_fallthru
      _
    %973 = vsyncpa [#allocation3], 1

</llo_original>
